<compile_context>
chip_gen: v5e
topology: v5e:2x2
jax: 0.10.0
libtpu: 0.0.40
codegen_flags: <defaults>
</compile_context>

<pallas_src>
import functools
import math

import jax
import jax.numpy as jnp
from jax.experimental import pallas as pl
from jax.experimental.pallas import tpu as pltpu

LANE = 128
SUBLANE = 8


def _round_up(n, m):
    return ((n + m - 1) // m) * m


def _cdiv(a, b):
    return (a + b - 1) // b


def actor_critic_kernel(x_ref, w1_ref, b1_ref, w2_ref, b2_ref, w34_ref, b34_ref,
                        action_ref, value_ref, *, action_size, compute_dtype):
    """One batch tile of the fused ActorCritic forward.

    h1   = tanh(x @ w1 + b1)
    h2   = tanh(h1 @ w2 + b2)
    head = h2 @ [w3 | w4 | 0...] + [b3 | b4 | 0...]   (single 128-lane matmul)
    action_ref[:, :A] = softmax(head[:, :A]);  value_ref[:, 0] = head[:, A]
    """
    x = x_ref[...].astype(compute_dtype)

    h1 = jnp.tanh(
        jnp.dot(x, w1_ref[...], preferred_element_type=jnp.float32) + b1_ref[...])
    h2 = jnp.tanh(
        jnp.dot(h1.astype(compute_dtype), w2_ref[...],
                preferred_element_type=jnp.float32) + b2_ref[...])

    # Fused policy/value heads -> one lane-dense [TB, 128] MXU result (VMEM only).
    head = jnp.dot(h2.astype(compute_dtype), w34_ref[...],
                   preferred_element_type=jnp.float32) + b34_ref[...]

    col = jax.lax.broadcasted_iota(jnp.int32, head.shape, 1)
    logits = jnp.where(col < action_size, head, -jnp.inf)   # mask padded lanes
    m = jnp.max(logits, axis=-1, keepdims=True)
    e = jnp.exp(logits - m)                                  # padded lanes -> 0
    probs = e * pl.reciprocal(jnp.sum(e, axis=-1, keepdims=True), approx=True)

    # Natural-width stores (narrow masked vst; HBM write traffic = useful bytes).
    action_ref[...] = probs[:, :action_size]
    # Column `action_size` of the fused head carries the value; extract via a
    # masked reduce (exact: single nonzero lane) to avoid an offset lane slice.
    value_ref[...] = jnp.sum(jnp.where(col == action_size, head, 0.0),
                             axis=-1, keepdims=True)


def prepare_params(params, *, use_bf16_matmul=False):
    """One-time weight padding / head fusion (hoisted out of the hot forward).

    Returns (w1p, b1p, w2p, b2p, w34, b34) with hidden / head dims padded to 128
    lanes and the policy/value heads fused into a single [hidden_pad, 128] weight
    (columns [0:A) = policy logits, column A = value).  Weights optionally
    pre-cast to bf16 (MXU inputs); biases stay f32 (added after f32 accumulation).
    """
    w1, b1, w2, b2, w3, b3, w4, b4 = params
    hidden_size = w1.shape[1]
    action_size = w3.shape[1]
    h_pad = _round_up(hidden_size, LANE)
    head_pad = _round_up(action_size + 1, LANE)
    wdt = jnp.bfloat16 if use_bf16_matmul else jnp.float32

    w1p = jnp.pad(w1, ((0, 0), (0, h_pad - hidden_size))).astype(wdt)
    b1p = jnp.pad(b1, ((0, 0), (0, h_pad - hidden_size))).astype(jnp.float32)
    w2p = jnp.pad(w2, ((0, h_pad - hidden_size), (0, h_pad - hidden_size))).astype(wdt)
    b2p = jnp.pad(b2, ((0, 0), (0, h_pad - hidden_size))).astype(jnp.float32)
    w34 = jnp.pad(jnp.concatenate([w3, w4], axis=1),
                  ((0, h_pad - hidden_size),
                   (0, head_pad - (action_size + 1)))).astype(wdt)
    b34 = jnp.pad(jnp.concatenate([b3, b4], axis=1),
                  ((0, 0), (0, head_pad - (action_size + 1)))).astype(jnp.float32)
    return (w1p, b1p, w2p, b2p, w34, b34)


def actor_critic_forward(x, prepared, *, action_size, block_batch=2048):
    """Pallas forward pass. Returns (action_probs [B, A], value [B, 1])."""
    w1p, b1p, w2p, b2p, w34, b34 = prepared
    batch, obs_size = x.shape
    h_pad = w1p.shape[1]
    head_pad = w34.shape[1]
    compute_dtype = w1p.dtype   # bf16 if prepare_params(use_bf16_matmul=True)

    # Batch tile: multiple of 8 sublanes; aim for >=2 grid steps so the
    # "parallel" batch axis can shard across both v7x TensorCores; cap at
    # block_batch rows (per-tile VMEM footprint ~a few MiB at 2048 rows).
    batch_r8 = _round_up(batch, SUBLANE)
    tb = min(block_batch, max(SUBLANE, _round_up(_cdiv(batch_r8, 2), SUBLANE)))
    grid = (_cdiv(batch, tb),)   # last block may be partial; Pallas masks it

    kernel = functools.partial(actor_critic_kernel,
                               action_size=action_size,
                               compute_dtype=compute_dtype)

    const = lambda i: (0, 0)  # weights: same block every step -> VMEM-resident
    action, value = pl.pallas_call(
        kernel,
        out_shape=(jax.ShapeDtypeStruct((batch, action_size), jnp.float32),
                   jax.ShapeDtypeStruct((batch, 1), jnp.float32)),
        grid=grid,
        in_specs=[
            pl.BlockSpec((tb, obs_size), lambda i: (i, 0)),   # x tile streams
            pl.BlockSpec((obs_size, h_pad), const),           # w1 (resident)
            pl.BlockSpec((1, h_pad), const),                  # b1
            pl.BlockSpec((h_pad, h_pad), const),              # w2
            pl.BlockSpec((1, h_pad), const),                  # b2
            pl.BlockSpec((h_pad, head_pad), const),           # fused w3|w4
            pl.BlockSpec((1, head_pad), const),               # fused b3|b4
        ],
        out_specs=(pl.BlockSpec((tb, action_size), lambda i: (i, 0)),
                   pl.BlockSpec((tb, 1), lambda i: (i, 0))),
        compiler_params=pltpu.CompilerParams(
            dimension_semantics=("parallel",),          # v7x: batch across 2 TCs
            vmem_limit_bytes=32 * 1024 * 1024),         # safe on v5e/v6e/v7x
    )(x, w1p, b1p, w2p, b2p, w34, b34)
    return action, value


def init_params(key, obs_size, hidden_size, action_size):
    """Deterministic init mimicking nn.Linear default (uniform +/- 1/sqrt(fan_in)).
    Weights returned as [in, out]; biases as [1, out]."""
    def linear(k, fan_in, fan_out):
        kw, kb = jax.random.split(k)
        bound = 1.0 / math.sqrt(fan_in)
        w = jax.random.uniform(kw, (fan_in, fan_out), jnp.float32, -bound, bound)
        b = jax.random.uniform(kb, (1, fan_out), jnp.float32, -bound, bound)
        return w, b

    k1, k2, k3, k4 = jax.random.split(key, 4)
    w1, b1 = linear(k1, obs_size, hidden_size)     # fc1
    w2, b2 = linear(k2, hidden_size, hidden_size)  # fc2
    w3, b3 = linear(k3, hidden_size, action_size)  # fc3 (policy logits)
    w4, b4 = linear(k4, hidden_size, 1)            # fc4 (value)
    return (w1, b1, w2, b2, w3, b3, w4, b4)


def reference_forward(x, params):
    """Plain-JAX reference for correctness check."""
    w1, b1, w2, b2, w3, b3, w4, b4 = params
    h1 = jnp.tanh(x @ w1 + b1)
    h2 = jnp.tanh(h1 @ w2 + b2)
    action = jax.nn.softmax(h2 @ w3 + b3, axis=1)
    value = h2 @ w4 + b4
    return action, value


if __name__ == "__main__":
    obs_size, action_size, hidden_size = 8, 4, 32

    key = jax.random.PRNGKey(0)
    kx, kp, kx2 = jax.random.split(key, 3)
    params = init_params(kp, obs_size, hidden_size, action_size)
    prepared = prepare_params(params)   # one-time weight padding / head fusion
    fwd = jax.jit(actor_critic_forward,
                  static_argnames=("action_size", "block_batch"))

    # --- small batch (rollout-style) ---
    batch = 2
    x = jax.random.normal(kx, (batch, obs_size), dtype=jnp.float32)
    action, value = fwd(x, prepared, action_size=action_size)
    jax.block_until_ready((action, value))

    ref_action, ref_value = reference_forward(x, params)
    assert action.shape == (batch, action_size)
    assert value.shape == (batch, 1)
    assert jnp.allclose(action, ref_action, atol=1e-3, rtol=1e-3)
    assert jnp.allclose(value, ref_value, atol=1e-4, rtol=1e-4)
    assert jnp.allclose(jnp.sum(action, axis=1), jnp.ones((batch,)), atol=1e-3)

    # --- larger non-multiple batch: exercises the multi-tile + masked-edge path ---
    batch2 = 1000
    x2 = jax.random.normal(kx2, (batch2, obs_size), dtype=jnp.float32)
    action2, value2 = fwd(x2, prepared, action_size=action_size)
    jax.block_until_ready((action2, value2))
    ref_action2, ref_value2 = reference_forward(x2, params)
    assert action2.shape == (batch2, action_size)
    assert value2.shape == (batch2, 1)
    assert jnp.allclose(action2, ref_action2, atol=1e-3, rtol=1e-3)
    assert jnp.allclose(value2, ref_value2, atol=1e-4, rtol=1e-4)
    assert jnp.allclose(jnp.sum(action2, axis=1), jnp.ones((batch2,)), atol=1e-3)

    print("KERNEL_OK")
</pallas_src>

<mosaic_0001>
module attributes {stable_mosaic.version = 11 : i64} {
  func.func @actor_critic_kernel(%arg0: i32, %arg1: memref<8x8xf32, #tpu.memory_space<vmem>>, %arg2: memref<8x128xf32, #tpu.memory_space<vmem>>, %arg3: memref<1x128xf32, #tpu.memory_space<vmem>>, %arg4: memref<128x128xf32, #tpu.memory_space<vmem>>, %arg5: memref<1x128xf32, #tpu.memory_space<vmem>>, %arg6: memref<128x128xf32, #tpu.memory_space<vmem>>, %arg7: memref<1x128xf32, #tpu.memory_space<vmem>>, %arg8: memref<8x4xf32, #tpu.memory_space<vmem>>, %arg9: memref<8x1xf32, #tpu.memory_space<vmem>>) attributes {dimension_semantics = [#tpu.dimension_semantics<parallel>], iteration_bounds = array<i64: 1>, scalar_prefetch = 0 : i64, scratch_operands = 0 : i64, tpu.core_type = #tpu.core_type<tc>, window_params = [{transform_indices = @transform_0, window_bounds = array<i64: 8, 8>}, {pipeline_mode = #tpu.pipeline_mode<synchronous>, transform_indices = @transform_1, window_bounds = array<i64: 8, 128>}, {pipeline_mode = #tpu.pipeline_mode<synchronous>, transform_indices = @transform_2, window_bounds = array<i64: 1, 128>}, {pipeline_mode = #tpu.pipeline_mode<synchronous>, transform_indices = @transform_3, window_bounds = array<i64: 128, 128>}, {pipeline_mode = #tpu.pipeline_mode<synchronous>, transform_indices = @transform_4, window_bounds = array<i64: 1, 128>}, {pipeline_mode = #tpu.pipeline_mode<synchronous>, transform_indices = @transform_5, window_bounds = array<i64: 128, 128>}, {pipeline_mode = #tpu.pipeline_mode<synchronous>, transform_indices = @transform_6, window_bounds = array<i64: 1, 128>}, {transform_indices = @transform_7, window_bounds = array<i64: 8, 4>}, {transform_indices = @transform_8, window_bounds = array<i64: 8, 1>}]} {
    %c0 = arith.constant 0 : index
    %c0_0 = arith.constant 0 : index
    %0 = vector.load %arg1[%c0, %c0_0] : memref<8x8xf32, #tpu.memory_space<vmem>>, vector<8x8xf32>
    %c0_1 = arith.constant 0 : index
    %c0_2 = arith.constant 0 : index
    %1 = vector.load %arg2[%c0_1, %c0_2] : memref<8x128xf32, #tpu.memory_space<vmem>>, vector<8x128xf32>
    %cst = arith.constant dense<0.000000e+00> : vector<8x128xf32>
    %2 = tpu.matmul %0, %1, %cst {dimension_numbers = #tpu.dot_dimension_numbers<[1], [0], [0], [1], [0, 0, 1, 1], [], []>} : vector<8x8xf32>, vector<8x128xf32>, vector<8x128xf32> -> vector<8x128xf32>
    %c0_3 = arith.constant 0 : index
    %c0_4 = arith.constant 0 : index
    %3 = vector.load %arg3[%c0_3, %c0_4] : memref<1x128xf32, #tpu.memory_space<vmem>>, vector<1x128xf32>
    %4 = vector.broadcast %3 : vector<1x128xf32> to vector<8x128xf32>
    %5 = arith.addf %2, %4 : vector<8x128xf32>
    %6 = math.tanh %5 : vector<8x128xf32>
    %c0_5 = arith.constant 0 : index
    %c0_6 = arith.constant 0 : index
    %7 = vector.load %arg4[%c0_5, %c0_6] : memref<128x128xf32, #tpu.memory_space<vmem>>, vector<128x128xf32>
    %cst_7 = arith.constant dense<0.000000e+00> : vector<8x128xf32>
    %8 = tpu.matmul %6, %7, %cst_7 {dimension_numbers = #tpu.dot_dimension_numbers<[1], [0], [0], [1], [0, 0, 1, 1], [], []>} : vector<8x128xf32>, vector<128x128xf32>, vector<8x128xf32> -> vector<8x128xf32>
    %c0_8 = arith.constant 0 : index
    %c0_9 = arith.constant 0 : index
    %9 = vector.load %arg5[%c0_8, %c0_9] : memref<1x128xf32, #tpu.memory_space<vmem>>, vector<1x128xf32>
    %10 = vector.broadcast %9 : vector<1x128xf32> to vector<8x128xf32>
    %11 = arith.addf %8, %10 : vector<8x128xf32>
    %12 = math.tanh %11 : vector<8x128xf32>
    %c0_10 = arith.constant 0 : index
    %c0_11 = arith.constant 0 : index
    %13 = vector.load %arg6[%c0_10, %c0_11] : memref<128x128xf32, #tpu.memory_space<vmem>>, vector<128x128xf32>
    %cst_12 = arith.constant dense<0.000000e+00> : vector<8x128xf32>
    %14 = tpu.matmul %12, %13, %cst_12 {dimension_numbers = #tpu.dot_dimension_numbers<[1], [0], [0], [1], [0, 0, 1, 1], [], []>} : vector<8x128xf32>, vector<128x128xf32>, vector<8x128xf32> -> vector<8x128xf32>
    %c0_13 = arith.constant 0 : index
    %c0_14 = arith.constant 0 : index
    %15 = vector.load %arg7[%c0_13, %c0_14] : memref<1x128xf32, #tpu.memory_space<vmem>>, vector<1x128xf32>
    %16 = vector.broadcast %15 : vector<1x128xf32> to vector<8x128xf32>
    %17 = arith.addf %14, %16 : vector<8x128xf32>
    %18 = tpu.iota {dimensions = array<i32: 1>} : vector<8x128xi32>
    %c4_i32 = arith.constant 4 : i32
    %19 = vector.broadcast %c4_i32 : i32 to vector<8x128xi32>
    %20 = arith.cmpi slt, %18, %19 : vector<8x128xi32>
    %cst_15 = arith.constant 0xFF800000 : f32
    %21 = vector.broadcast %cst_15 : f32 to vector<8x128xf32>
    %22 = arith.select %20, %17, %21 : vector<8x128xi1>, vector<8x128xf32>
    %cst_16 = arith.constant dense<0xFF800000> : vector<8xf32>
    %23 = vector.multi_reduction <maximumf>, %22, %cst_16 [1] : vector<8x128xf32> to vector<8xf32>
    %24 = vector.shape_cast %23 : vector<8xf32> to vector<8x1xf32>
    %25 = vector.broadcast %24 : vector<8x1xf32> to vector<8x128xf32>
    %26 = arith.subf %22, %25 : vector<8x128xf32>
    %27 = math.exp %26 : vector<8x128xf32>
    %cst_17 = arith.constant dense<0.000000e+00> : vector<8xf32>
    %28 = vector.multi_reduction <add>, %27, %cst_17 [1] : vector<8x128xf32> to vector<8xf32>
    %29 = vector.shape_cast %28 : vector<8xf32> to vector<8x1xf32>
    %30 = tpu.reciprocal %29 {approx = true} : vector<8x1xf32> -> vector<8x1xf32>
    %31 = vector.broadcast %30 : vector<8x1xf32> to vector<8x128xf32>
    %32 = arith.mulf %27, %31 : vector<8x128xf32>
    %33 = vector.extract_strided_slice %32 {offsets = [0, 0], sizes = [8, 4], strides = [1, 1]} : vector<8x128xf32> to vector<8x4xf32>
    %c0_18 = arith.constant 0 : index
    %c0_19 = arith.constant 0 : index
    %34 = vector.load %arg8[%c0_18, %c0_19] : memref<8x4xf32, #tpu.memory_space<vmem>>, vector<8x4xf32>
    tpu.vector_store %arg8[%c0_18, %c0_19], %33 {strides = array<i32>} : memref<8x4xf32, #tpu.memory_space<vmem>>, vector<8x4xf32>,
    %c4_i32_20 = arith.constant 4 : i32
    %35 = vector.broadcast %c4_i32_20 : i32 to vector<8x128xi32>
    %36 = arith.cmpi eq, %18, %35 : vector<8x128xi32>
    %cst_21 = arith.constant 0.000000e+00 : f32
    %37 = vector.broadcast %cst_21 : f32 to vector<8x128xf32>
    %38 = arith.select %36, %17, %37 : vector<8x128xi1>, vector<8x128xf32>
    %cst_22 = arith.constant dense<0.000000e+00> : vector<8xf32>
    %39 = vector.multi_reduction <add>, %38, %cst_22 [1] : vector<8x128xf32> to vector<8xf32>
    %40 = vector.shape_cast %39 : vector<8xf32> to vector<8x1xf32>
    %c0_23 = arith.constant 0 : index
    %c0_24 = arith.constant 0 : index
    %41 = vector.load %arg9[%c0_23, %c0_24] : memref<8x1xf32, #tpu.memory_space<vmem>>, vector<8x1xf32>
    tpu.vector_store %arg9[%c0_23, %c0_24], %40 {strides = array<i32>} : memref<8x1xf32, #tpu.memory_space<vmem>>, vector<8x1xf32>,
    return
  }
  func.func @transform_0(%arg0: i32) -> (i32, i32) {
    %c0_i32 = arith.constant 0 : i32
    %c0_i32_0 = arith.constant 0 : i32
    return %arg0, %c0_i32 : i32, i32
  }
  func.func @transform_1(%arg0: i32) -> (i32, i32) {
    %c0_i32 = arith.constant 0 : i32
    %c0_i32_0 = arith.constant 0 : i32
    %c0_i32_1 = arith.constant 0 : i32
    return %c0_i32, %c0_i32_0 : i32, i32
  }
  func.func @transform_2(%arg0: i32) -> (i32, i32) {
    %c0_i32 = arith.constant 0 : i32
    %c0_i32_0 = arith.constant 0 : i32
    %c0_i32_1 = arith.constant 0 : i32
    return %c0_i32, %c0_i32_0 : i32, i32
  }
  func.func @transform_3(%arg0: i32) -> (i32, i32) {
    %c0_i32 = arith.constant 0 : i32
    %c0_i32_0 = arith.constant 0 : i32
    %c0_i32_1 = arith.constant 0 : i32
    return %c0_i32, %c0_i32_0 : i32, i32
  }
  func.func @transform_4(%arg0: i32) -> (i32, i32) {
    %c0_i32 = arith.constant 0 : i32
    %c0_i32_0 = arith.constant 0 : i32
    %c0_i32_1 = arith.constant 0 : i32
    return %c0_i32, %c0_i32_0 : i32, i32
  }
  func.func @transform_5(%arg0: i32) -> (i32, i32) {
    %c0_i32 = arith.constant 0 : i32
    %c0_i32_0 = arith.constant 0 : i32
    %c0_i32_1 = arith.constant 0 : i32
    return %c0_i32, %c0_i32_0 : i32, i32
  }
  func.func @transform_6(%arg0: i32) -> (i32, i32) {
    %c0_i32 = arith.constant 0 : i32
    %c0_i32_0 = arith.constant 0 : i32
    %c0_i32_1 = arith.constant 0 : i32
    return %c0_i32, %c0_i32_0 : i32, i32
  }
  func.func @transform_7(%arg0: i32) -> (i32, i32) {
    %c0_i32 = arith.constant 0 : i32
    %c0_i32_0 = arith.constant 0 : i32
    return %arg0, %c0_i32 : i32, i32
  }
  func.func @transform_8(%arg0: i32) -> (i32, i32) {
    %c0_i32 = arith.constant 0 : i32
    %c0_i32_0 = arith.constant 0 : i32
    return %arg0, %c0_i32 : i32, i32
  }
}

</mosaic_0001>

<llo_original>
// kernel: actor_critic_forward.1
$region0: #{actor_critic_forward.1}
  #allocation0 [shape = 'u32[]', space=smem, size = 0x4, offset = 0x4, fixed_abs, tag = 'smem constant byte address 0x4 - core index']
  #allocation1 [shape = 'u32[72,128]{1,0:T(1,128)}', space=vmem, size = 0x9000, scoped, tag = 'internal scratch']
  %s0 = inlined_call_operand.hbm [shape: f32[2,8], index: 0, kind: input, shape index: {}]
  %s1 = inlined_call_operand.hbm [shape: f32[8,128], index: 1, kind: input, shape index: {}]
  %s2 = inlined_call_operand.vmem [shape: f32[1,128], index: 2, kind: input, shape index: {}]
  %s3 = inlined_call_operand.hbm [shape: f32[128,128], index: 3, kind: input, shape index: {}]
  %s4 = inlined_call_operand.vmem [shape: f32[1,128], index: 4, kind: input, shape index: {}]
  %s5 = inlined_call_operand.hbm [shape: f32[128,128], index: 5, kind: input, shape index: {}]
  %s6 = inlined_call_operand.vmem [shape: f32[1,128], index: 6, kind: input, shape index: {}]
  %s7 = inlined_call_operand.hbm [shape: f32[2,4], index: 7, kind: output, shape index: {0}]
  %s8 = inlined_call_operand.vmem [shape: f32[2,1], index: 8, kind: output, shape index: {1}]
  %9 = xla_tuple %s7, %s8
  %s10 = sld [smem:[#allocation0]]
  $region92: #{actor_critic_forward.1} parent=0
    _
  %s12 = ssub.s32 1, %s10
  %s13 = scalar_select 0, %s12, %s10
  $region1: #{actor_critic_forward.1} parent=0
    #allocation2 [shape = 'u8[4096]{0}', space=vmem, size = 0x1000, scoped, tag = 'input window, operand 0, single buffered']
    #allocation3 [shape = 's32[1]{0}', space=sflag, size = 0x4, scoped, tag = 'scoped memory for actor_critic_forward.1']
    #allocation4 [shape = 's32[1]{0}', space=sflag, size = 0x4, scoped, tag = 'scoped memory for actor_critic_forward.1']
    #allocation5 [shape = 'u8[4096]{0}', space=vmem, size = 0x1000, scoped, tag = 'input window, operand 1, single buffered']
    #allocation6 [shape = 's32[1]{0}', space=sflag, size = 0x4, scoped, tag = 'scoped memory for actor_critic_forward.1']
    #allocation7 [shape = 'u8[65536]{0}', space=vmem, size = 0x10000, scoped, tag = 'input window, operand 3, single buffered']
    #allocation8 [shape = 'u8[65536]{0}', space=vmem, size = 0x10000, scoped, tag = 'input window, operand 5, single buffered']
    #allocation9 [shape = 's32[1]{0}', space=sflag, size = 0x4, scoped, tag = 'scoped memory for actor_critic_forward.1']
    #allocation10 [shape = 'u8[4096]{0}', space=vmem, size = 0x1000, scoped, tag = 'output window, operand 0, single buffered']
    #allocation11 [shape = 'u8[4096]{0}', space=vmem, size = 0x1000, scoped, tag = 'output window, operand 1, single buffered']
    %14 = vsyncpa [#allocation3], 0
    %15 = vsyncpa [#allocation6], 0
    %16 = vsyncpa [#allocation9], 0
    %17 = vsyncpa [#allocation4], 0
    // Predicated region
    $region2: #{actor_critic_forward.1} parent=1 // pred_check
      _
    $region3: #{actor_critic_forward.1} parent=1 // pred_check_branch
      %19 = sbr.rel (0) target = $region5
    $region4: #{actor_critic_forward.1} parent=1 // pred_region
      %21 = vsyncadd [#allocation3], 96
      %s22 = sshll.u32 %s0, 4
      %s23 = int_to_ptr.hbm [resolvable:$true] %s22
      %s24 = sshll.u32 [#allocation2], 4
      %s25 = int_to_ptr.vmem [resolvable:$true] %s24
      %30 = dma.hbm_to_vmem [thread:$0]  %s23, 32, %s25, [#allocation3], 32, 32, 2
    $region5: #{actor_critic_forward.1} parent=1 // pred_fallthru
      _
    // Predicated region
    $region6: #{actor_critic_forward.1} parent=1 // pred_check
      _
    $region7: #{actor_critic_forward.1} parent=1 // pred_check_branch
      %32 = sbr.rel (0) target = $region9
    $region8: #{actor_critic_forward.1} parent=1 // pred_region
      %34 = vsyncadd [#allocation6], 0
      %s36 = sshll.u32 %s1, 4
      %s37 = int_to_ptr.hbm [resolvable:$true] %s36
      %s38 = sshll.u32 [#allocation5], 4
      %s39 = int_to_ptr.vmem [resolvable:$true] %s38
      %41 = dma.hbm_to_vmem [thread:$0]  %s37, 128, %s39, [#allocation6]
    $region9: #{actor_critic_forward.1} parent=1 // pred_fallthru
      _
    // Predicated region
    $region10: #{actor_critic_forward.1} parent=1 // pred_check
      _
    $region11: #{actor_critic_forward.1} parent=1 // pred_check_branch
      %43 = sbr.rel (0) target = $region13
    $region12: #{actor_critic_forward.1} parent=1 // pred_region
      _
    $region13: #{actor_critic_forward.1} parent=1 // pred_fallthru
      _
    // Predicated region
    $region14: #{actor_critic_forward.1} parent=1 // pred_check
      _
    $region15: #{actor_critic_forward.1} parent=1 // pred_check_branch
      %45 = sbr.rel (0) target = $region17
    $region16: #{actor_critic_forward.1} parent=1 // pred_region
      %47 = vsyncadd [#allocation6], 0
      %s48 = sshll.u32 %s3, 4
      %s49 = int_to_ptr.hbm [resolvable:$true] %s48
      %s50 = sshll.u32 [#allocation7], 4
      %s51 = int_to_ptr.vmem [resolvable:$true] %s50
      %56 = dma.hbm_to_vmem [thread:$0]  %s49, 2048, %s51, [#allocation6], 128, 128, 8
    $region17: #{actor_critic_forward.1} parent=1 // pred_fallthru
      _
    // Predicated region
    $region18: #{actor_critic_forward.1} parent=1 // pred_check
      _
    $region19: #{actor_critic_forward.1} parent=1 // pred_check_branch
      %58 = sbr.rel (0) target = $region21
    $region20: #{actor_critic_forward.1} parent=1 // pred_region
      _
    $region21: #{actor_critic_forward.1} parent=1 // pred_fallthru
      _
    // Predicated region
    $region22: #{actor_critic_forward.1} parent=1 // pred_check
      _
    $region23: #{actor_critic_forward.1} parent=1 // pred_check_branch
      %60 = sbr.rel (0) target = $region25
    $region24: #{actor_critic_forward.1} parent=1 // pred_region
      %62 = vsyncadd [#allocation9], 0
      %s63 = sshll.u32 %s5, 4
      %s64 = int_to_ptr.hbm [resolvable:$true] %s63
      %s65 = sshll.u32 [#allocation8], 4
      %s66 = int_to_ptr.vmem [resolvable:$true] %s65
      %71 = dma.hbm_to_vmem [thread:$0]  %s64, 2048, %s66, [#allocation9], 128, 128, 8
    $region25: #{actor_critic_forward.1} parent=1 // pred_fallthru
      _
    // Predicated region
    $region26: #{actor_critic_forward.1} parent=1 // pred_check
      _
    $region27: #{actor_critic_forward.1} parent=1 // pred_check_branch
      %73 = sbr.rel (0) target = $region29
    $region28: #{actor_critic_forward.1} parent=1 // pred_region
      _
    $region29: #{actor_critic_forward.1} parent=1 // pred_fallthru
      _
    // Predicated region
    $region30: #{actor_critic_forward.1} parent=1 // pred_check
      _
    $region31: #{actor_critic_forward.1} parent=1 // pred_check_branch
      %75 = sbr.rel (0) target = $region33
    $region32: #{actor_critic_forward.1} parent=1 // pred_region
      %77 = dma.done [#allocation3], 128
    $region33: #{actor_critic_forward.1} parent=1 // pred_fallthru
      _
    // Predicated region
    $region34: #{actor_critic_forward.1} parent=1 // pred_check
      _
    $region35: #{actor_critic_forward.1} parent=1 // pred_check_branch
      %79 = sbr.rel (0) target = $region37
    $region36: #{actor_critic_forward.1} parent=1 // pred_region
      %81 = dma.done [#allocation6], 128
    $region37: #{actor_critic_forward.1} parent=1 // pred_fallthru
      _
    // Predicated region
    $region38: #{actor_critic_forward.1} parent=1 // pred_check
      _
    $region39: #{actor_critic_forward.1} parent=1 // pred_check_branch
      %83 = sbr.rel (0) target = $region41
    $region40: #{actor_critic_forward.1} parent=1 // pred_region
      %85 = dma.done [#allocation6], 2048
    $region41: #{actor_critic_forward.1} parent=1 // pred_fallthru
      _
    // Predicated region
    $region42: #{actor_critic_forward.1} parent=1 // pred_check
      _
    $region43: #{actor_critic_forward.1} parent=1 // pred_check_branch
      %87 = sbr.rel (0) target = $region45
    $region44: #{actor_critic_forward.1} parent=1 // pred_region
      %89 = dma.done [#allocation9], 2048
    $region45: #{actor_critic_forward.1} parent=1 // pred_fallthru
      _
    %v90 = vld [vmem:[#allocation2] sm:$0xff]
    %v91 = vld [vmem:[#allocation5] sm:$0xff]
    %v92 = vld [vmem:[%s2] sm:$0x1]
    %v94 = vperm.slane %v92, 0
    %vm96 = vcmask 64512
    %v98 = vsel %vm96, %v90, 0
    %100 = vmatpush.msra.mxu0 0.0
    %101 = vmatpush.msra.mxu0 0.0
    %102 = vmatpush.msra.mxu0 0.0
    %103 = vmatpush.msra.mxu0 0.0
    %104 = vmatpush.msra.mxu0 0.0
    %105 = vmatpush.msra.mxu0 0.0
    %106 = vmatpush.msra.mxu0 0.0
    %107 = vmatpush.msra.mxu0 0.0
    %108 = vmatpush.msra.mxu0 0.0
    %109 = vmatpush.msra.mxu0 0.0
    %110 = vmatpush.msra.mxu0 0.0
    %111 = vmatpush.msra.mxu0 0.0
    %112 = vmatpush.msra.mxu0 0.0
    %113 = vmatpush.msra.mxu0 0.0
    %114 = vmatpush.msra.mxu0 0.0
    %115 = vmatpush.msra.mxu0 %v91
    %116 = vmatmul.f32.gmra.mxu0 %v98
    %v117 = vpop.f32.mrf.mxu0
    %v118 = vadd.f32 %v94, %v117
    %119 = vdwg.mxu0
    %v120 = vtanh.pop %v118
    %v121 = vld [vmem:[#allocation7] sm:$0xff]
    %v122 = vld [vmem:[#allocation7 + $0x8] sm:$0xff]
    %v123 = vld [vmem:[#allocation7 + $0x10] sm:$0xff]
    %v124 = vld [vmem:[#allocation7 + $0x18] sm:$0xff]
    %v125 = vld [vmem:[#allocation7 + $0x20] sm:$0xff]
    %v126 = vld [vmem:[#allocation7 + $0x28] sm:$0xff]
    %v127 = vld [vmem:[#allocation7 + $0x30] sm:$0xff]
    %v128 = vld [vmem:[#allocation7 + $0x38] sm:$0xff]
    %v129 = vld [vmem:[#allocation7 + $0x40] sm:$0xff]
    %v130 = vld [vmem:[#allocation7 + $0x48] sm:$0xff]
    %v131 = vld [vmem:[#allocation7 + $0x50] sm:$0xff]
    %v132 = vld [vmem:[#allocation7 + $0x58] sm:$0xff]
    %v133 = vld [vmem:[#allocation7 + $0x60] sm:$0xff]
    %v134 = vld [vmem:[#allocation7 + $0x68] sm:$0xff]
    %v135 = vld [vmem:[#allocation7 + $0x70] sm:$0xff]
    %v136 = vld [vmem:[#allocation7 + $0x78] sm:$0xff]
    %v137 = vld [vmem:[%s4] sm:$0x1]
    %v139 = vperm.slane %v137, 0
    %141 = vmatpush.msra.mxu0 %v136
    %142 = vmatpush.msra.mxu0 %v135
    %143 = vmatpush.msra.mxu0 %v134
    %144 = vmatpush.msra.mxu0 %v133
    %145 = vmatpush.msra.mxu0 %v132
    %146 = vmatpush.msra.mxu0 %v131
    %147 = vmatpush.msra.mxu0 %v130
    %148 = vmatpush.msra.mxu0 %v129
    %149 = vmatpush.msra.mxu0 %v128
    %150 = vmatpush.msra.mxu0 %v127
    %151 = vmatpush.msra.mxu0 %v126
    %152 = vmatpush.msra.mxu0 %v125
    %153 = vmatpush.msra.mxu0 %v124
    %154 = vmatpush.msra.mxu0 %v123
    %155 = vmatpush.msra.mxu0 %v122
    %156 = vmatpush.msra.mxu0 %v121
    %157 = vmatmul.f32.gmra.mxu0 %v120
    %v158 = vpop.f32.mrf.mxu0
    %v159 = vadd.f32 %v139, %v158
    %160 = vdwg.mxu0
    %v161 = vtanh.pop %v159
    %v162 = vld [vmem:[#allocation8] sm:$0xff]
    %v163 = vld [vmem:[#allocation8 + $0x8] sm:$0xff]
    %v164 = vld [vmem:[#allocation8 + $0x10] sm:$0xff]
    %v165 = vld [vmem:[#allocation8 + $0x18] sm:$0xff]
    %v166 = vld [vmem:[#allocation8 + $0x20] sm:$0xff]
    %v167 = vld [vmem:[#allocation8 + $0x28] sm:$0xff]
    %v168 = vld [vmem:[#allocation8 + $0x30] sm:$0xff]
    %v169 = vld [vmem:[#allocation8 + $0x38] sm:$0xff]
    %v170 = vld [vmem:[#allocation8 + $0x40] sm:$0xff]
    %v171 = vld [vmem:[#allocation8 + $0x48] sm:$0xff]
    %v172 = vld [vmem:[#allocation8 + $0x50] sm:$0xff]
    %v173 = vld [vmem:[#allocation8 + $0x58] sm:$0xff]
    %v174 = vld [vmem:[#allocation8 + $0x60] sm:$0xff]
    %v175 = vld [vmem:[#allocation8 + $0x68] sm:$0xff]
    %v176 = vld [vmem:[#allocation8 + $0x70] sm:$0xff]
    %v177 = vld [vmem:[#allocation8 + $0x78] sm:$0xff]
    %v178 = vld [vmem:[%s6] sm:$0x1]
    %v180 = vperm.slane %v178, 0
    %182 = vmatpush.msra.mxu0 %v177
    %183 = vmatpush.msra.mxu0 %v176
    %184 = vmatpush.msra.mxu0 %v175
    %185 = vmatpush.msra.mxu0 %v174
    %186 = vmatpush.msra.mxu0 %v173
    %187 = vmatpush.msra.mxu0 %v172
    %188 = vmatpush.msra.mxu0 %v171
    %189 = vmatpush.msra.mxu0 %v170
    %190 = vmatpush.msra.mxu0 %v169
    %191 = vmatpush.msra.mxu0 %v168
    %192 = vmatpush.msra.mxu0 %v167
    %193 = vmatpush.msra.mxu0 %v166
    %194 = vmatpush.msra.mxu0 %v165
    %195 = vmatpush.msra.mxu0 %v164
    %196 = vmatpush.msra.mxu0 %v163
    %197 = vmatpush.msra.mxu0 %v162
    %198 = vmatmul.f32.gmra.mxu0 %v161
    %v199 = vpop.f32.mrf.mxu0
    %v200 = vadd.f32 %v180, %v199
    %201 = vdwg.mxu0
    %v202 = vlaneseq
    %v203 = vand.u32 %v202, 127
    %vm204 = vcmp.lt.s32.totalorder %v203, 4
    %v205 = vsel %vm204, %v200, -inf
    %206 = vmax.xlane.f32.xlu0 %v205
    %v207 = vpop.xlane.xlu0 %206
    %v208 = vsub.f32 %v205, %v207
    %v209 = vmul.f32 %v208, 1.442695
    %v210 = vpow.pop %v209
    %211 = vadd.xlane.f32.xlu0 %v210
    %v212 = vpop.xlane.xlu0 %211
    %v213 = vrcp.pop %v212
    %v214 = vmul.f32 %v210, %v213
    %vm215 = vcmask 31744
    %216 = vst.msk [vmem:[#allocation10] sm:$0xff] %vm215, %v214
    %vm217 = vcmp.eq.s32.totalorder %v203, 4
    %v218 = vsel %vm217, %v200, 0.0
    %219 = vadd.xlane.f32.xlu0 %v218
    %v220 = vpop.xlane.xlu0 %219
    %vm221 = vcmask 7168
    %222 = vst.msk [vmem:[#allocation11] sm:$0xff] %vm221, %v220
    // Predicated region
    $region46: #{actor_critic_forward.1} parent=1 // pred_check
      _
    $region47: #{actor_critic_forward.1} parent=1 // pred_check_branch
      %224 = sbr.rel (0) target = $region49
    $region48: #{actor_critic_forward.1} parent=1 // pred_region
      %226 = vsyncadd [#allocation4], 96
      %s227 = sshll.u32 [#allocation10], 4
      %s228 = int_to_ptr.vmem [resolvable:$true] %s227
      %s229 = sshll.u32 %s7, 4
      %s230 = int_to_ptr.hbm [resolvable:$true] %s229
      %235 = dma.vmem_to_hbm [thread:$0]  %s228, 32, %s230, [#allocation4], 32, 32, 2
    $region49: #{actor_critic_forward.1} parent=1 // pred_fallthru
      _
    // Predicated region
    $region50: #{actor_critic_forward.1} parent=1 // pred_check
      _
    $region51: #{actor_critic_forward.1} parent=1 // pred_check_branch
      %237 = sbr.rel (0) target = $region53
    $region52: #{actor_critic_forward.1} parent=1 // pred_region
      // Predicated region
      $region54: #{actor_critic_forward.1} parent=52 // pred_check
        _
      $region55: #{actor_critic_forward.1} parent=52 // pred_check_branch
        %239 = sbr.rel (0) target = $region57
      $region56: #{actor_critic_forward.1} parent=52 // pred_region
        // Predicated region
        $region58: #{actor_critic_forward.1} parent=56 // pred_check
          _
        $region59: #{actor_critic_forward.1} parent=56 // pred_check_branch
          %241 = sbr.rel target = $region61
        $region60: #{actor_critic_forward.1} parent=56 // pred_region
          // Predicated region
          $region73: #{actor_critic_forward.1} parent=60 // pred_check
            _
          $region74: #{actor_critic_forward.1} parent=60 // pred_check_branch
            %257 = sbr.rel (0) target = $region76
          $region75: #{actor_critic_forward.1} parent=60 // pred_region
            %s259 = ssub.s32 4, 1
            loop: start=0, step=1, limit=1
            $region77: #{actor_critic_forward.1} parent=75 // loop_pre_header
              _
            $region78: #{actor_critic_forward.1} parent=75 // loop_header
              %s261 = sphi 0, %s265
              %p262 = scmp.ge.s32.totalorder %s261, 1
              %s266 = sphi [#allocation11], [#allocation11]
              %s267 = sphi %s8, %s8
            $region79: #{actor_critic_forward.1} parent=75 // loop_header_branch
              %264 = sbr.rel (%p262) target = $region83
            $region80: #{actor_critic_forward.1} parent=75 // loop_body
              %v268 = vld [vmem:[%s266] sm:%s259]
              %269 = vst [vmem:[%s267] sm:%s259] %v268
            $region81: #{actor_critic_forward.1} parent=75 // loop_footer
              %s265 = sadd.s32 1, %s261
            $region82: #{actor_critic_forward.1} parent=75 // loop_footer_branch
              %260 = sbr.rel target = $region78
            $region83: #{actor_critic_forward.1} parent=75 // loop_exit
              _
          $region76: #{actor_critic_forward.1} parent=60 // pred_fallthru
            _
        $region61: #{actor_critic_forward.1} parent=56 // pred_fallthru
          _
        // Predicated region
        $region62: #{actor_critic_forward.1} parent=56 // pred_check
          _
        $region63: #{actor_critic_forward.1} parent=56 // pred_check_branch
          %243 = sbr.rel (0) target = $region65
        $region64: #{actor_critic_forward.1} parent=56 // pred_region
          %s245 = ssub.s32 4, 1
          loop: start=0, step=1, limit=1
          $region66: #{actor_critic_forward.1} parent=64 // loop_pre_header
            _
          $region67: #{actor_critic_forward.1} parent=64 // loop_header
            %s247 = sphi 0, %s251
            %p248 = scmp.ge.s32.totalorder %s247, 1
            %s252 = sphi [#allocation11], [#allocation11]
            %s253 = sphi %s8, %s8
          $region68: #{actor_critic_forward.1} parent=64 // loop_header_branch
            %250 = sbr.rel (%p248) target = $region72
          $region69: #{actor_critic_forward.1} parent=64 // loop_body
            %v254 = vld [vmem:[%s252] sm:%s245]
            %255 = vst [vmem:[%s253] sm:%s245] %v254
          $region70: #{actor_critic_forward.1} parent=64 // loop_footer
            %s251 = sadd.s32 1, %s247
          $region71: #{actor_critic_forward.1} parent=64 // loop_footer_branch
            %246 = sbr.rel target = $region67
          $region72: #{actor_critic_forward.1} parent=64 // loop_exit
            _
        $region65: #{actor_critic_forward.1} parent=56 // pred_fallthru
          _
      $region57: #{actor_critic_forward.1} parent=52 // pred_fallthru
        _
      %270 = vnop
    $region53: #{actor_critic_forward.1} parent=1 // pred_fallthru
      _
    // Predicated region
    $region84: #{actor_critic_forward.1} parent=1 // pred_check
      _
    $region85: #{actor_critic_forward.1} parent=1 // pred_check_branch
      %272 = sbr.rel (0) target = $region87
    $region86: #{actor_critic_forward.1} parent=1 // pred_region
      %274 = dma.done [#allocation4], 128
    $region87: #{actor_critic_forward.1} parent=1 // pred_fallthru
      _
    // Predicated region
    $region88: #{actor_critic_forward.1} parent=1 // pred_check
      _
    $region89: #{actor_critic_forward.1} parent=1 // pred_check_branch
      %276 = sbr.rel (0) target = $region91
    $region90: #{actor_critic_forward.1} parent=1 // pred_region
      _
    $region91: #{actor_critic_forward.1} parent=1 // pred_fallthru
      _
    %277 = vsyncpa [#allocation3], 1
    %278 = vsyncpa [#allocation6], 1
    %279 = vsyncpa [#allocation9], 1
    %280 = vsyncpa [#allocation4], 1

</llo_original>
